<compile_context>
chip_gen: v7x
topology: tpu7x:2x2x1
jax: 0.10.0
libtpu: 0.0.40
codegen_flags: <defaults>
</compile_context>

<pallas_src>
import math

import jax
import jax.numpy as jnp
from jax.experimental import pallas as pl
from jax.experimental.pallas import tpu as pltpu


_LANE = 128      # output / weight minor dim padded to a multiple of this
_SUBLANE = 16    # row-tile granularity (safe for both f32 (8) and bf16 (16))


def _round_up(x, m):
    return ((x + m - 1) // m) * m


def _cdiv(a, b):
    return -(-a // b)


def _gcn_kernel_scratch(x_ref, adj_ref, w_ref, b_ref, out_ref, support_ref):
    """One (batch, row-tile) step with a persistent per-batch support scratch.

    x_ref:       (N, F_in)       full node features of graph b (native dtype)
    adj_ref:     (TR, N)         row tile of the adjacency matrix (native dtype)
    w_ref:       (F_in, F_out_p) weight in compute dtype, lane-dense
    b_ref:       (1, F_out_p)    bias (zeros when the layer has no bias), f32
    out_ref:     (TR, F_out_p)   output row tile
    support_ref: (N, F_out_p)    VMEM scratch in compute dtype, persists across
                                 row tiles of the same batch element
    """
    cd = support_ref.dtype

    # support = x @ W only on the first row tile of each batch element.
    @pl.when(pl.program_id(1) == 0)
    def _():
        s = jnp.dot(x_ref[...].astype(w_ref.dtype), w_ref[...],
                    preferred_element_type=jnp.float32)
        support_ref[...] = s.astype(cd)

    out = jnp.dot(adj_ref[...].astype(cd), support_ref[...],
                  preferred_element_type=jnp.float32)
    out_ref[...] = (out + b_ref[...]).astype(out_ref.dtype)


def _gcn_kernel_fused(x_ref, adj_ref, w_ref, b_ref, out_ref):
    """Recompute x @ W per row tile (no scratch) -> fully parallel grid.

    Used when there is a single row tile per batch element, or when B == 1 and
    the redundant x @ W is cheap (F_in << TR), so both grid axes can be marked
    "parallel" and v7x's two TensorCores split one graph.
    """
    cd = w_ref.dtype
    s = jnp.dot(x_ref[...].astype(cd), w_ref[...],
                preferred_element_type=jnp.float32).astype(cd)
    out = jnp.dot(adj_ref[...].astype(cd), s,
                  preferred_element_type=jnp.float32)
    out_ref[...] = (out + b_ref[...]).astype(out_ref.dtype)


def graph_convolution(x, adj, weight, bias=None, *,
                      compute_dtype=jnp.bfloat16,
                      row_tile=None,
                      vmem_budget_bytes=None):
    """Pallas implementation of GraphConvolution.forward.

    x:             (B, N, F_in)
    adj:           (B, N, N)     (pass it pre-stored in `compute_dtype` to
                                  halve the HBM-bound adjacency stream)
    weight:        (F_in, F_out)
    bias:          (1, 1, F_out) or None
    compute_dtype: MXU operand dtype (default bf16); accumulation stays f32,
                   output keeps x.dtype.  Pass jnp.float32 for full precision.
    row_tile:      optional explicit adjacency row-tile hint.
    returns        (B, N, F_out)
    """
    B, N, F_in = x.shape
    F_in_w, F_out = weight.shape
    assert F_in_w == F_in, "weight first dim must match x feature dim"
    assert adj.shape == (B, N, N), "adj must be (B, N, N)"
    out_dtype = x.dtype
    if compute_dtype is None:
        compute_dtype = x.dtype
    compute_dtype = jnp.dtype(compute_dtype)

    # ---- weight / bias: tiny, cast + lane-pad in the wrapper (XLA fuses) ----
    F_out_p = _round_up(F_out, _LANE)
    w = weight.astype(compute_dtype)
    if F_out_p != F_out:
        w = jnp.pad(w, ((0, 0), (0, F_out_p - F_out)))
    if bias is None:
        bias2d = jnp.zeros((1, F_out_p), jnp.float32)
    else:
        bias2d = bias.reshape(1, F_out).astype(jnp.float32)
        if F_out_p != F_out:
            bias2d = jnp.pad(bias2d, ((0, 0), (0, F_out_p - F_out)))

    # x and adj are consumed in their stored dtype (no wrapper pad/cast copies);
    # narrowing to compute_dtype happens per-tile inside the kernel.
    x_it = x.dtype.itemsize
    adj_it = adj.dtype.itemsize
    w_it = compute_dtype.itemsize
    sup_it = compute_dtype.itemsize
    out_it = jnp.dtype(out_dtype).itemsize

    # ---- per-generation VMEM budget (v5e/v6e: 128 MiB, v7x: 64 MiB) ----
    try:
        vmem_cap = int(pltpu.get_tpu_info().vmem_capacity_bytes)
    except Exception:
        vmem_cap = 64 * 1024 * 1024   # conservative (v7x-sized) fallback
    if vmem_budget_bytes is None:
        vmem_budget_bytes = int(0.68 * vmem_cap)

    # "Fixed" per-batch VMEM: double-buffered x / weight / bias + support scratch.
    fixed = (2 * N * F_in * x_it
             + 2 * F_in * F_out_p * w_it
             + 2 * F_out_p * 4
             + N * F_out_p * sup_it)
    # Per output row: double-buffered adj row + double-buffered out row.
    per_row = 2 * (N * adj_it + F_out_p * out_it)

    # ---- divisor-friendly row tile: balanced tiles, padding never needed ----
    if row_tile is not None:
        tr_cap = max(_SUBLANE, _round_up(int(row_tile), _SUBLANE))
    else:
        avail = max(vmem_budget_bytes - fixed, per_row * _SUBLANE)
        tr_cap = max(_SUBLANE, (avail // per_row) // _SUBLANE * _SUBLANE)

    if N <= tr_cap:
        n_tiles, TR = 1, N                      # one step per batch element
    else:
        n_tiles = _cdiv(N, tr_cap)
        TR = _round_up(_cdiv(N, n_tiles), _SUBLANE)
        n_tiles = _cdiv(N, TR)                  # last tile may be partial

    # Redundant-support (scratch-free, fully parallel) path when it is cheap.
    use_fused = (n_tiles == 1) or (B == 1 and 8 * F_in <= TR)

    # ---- VMEM limit sized to the chosen tiles, capped below physical VMEM ----
    est_vmem = (2 * N * F_in * x_it
                + 2 * F_in * F_out_p * w_it
                + 2 * F_out_p * 4
                + (0 if use_fused else N * F_out_p * sup_it)
                + 2 * TR * (N * adj_it + F_out_p * out_it))
    vmem_limit = int(min(max(int(1.4 * est_vmem) + (1 << 20), 32 * 1024 * 1024),
                         int(0.85 * vmem_cap)))

    # ---- advisory cost estimate for XLA scheduling of short kernels ----
    flops = 2 * B * N * F_out_p * (F_in + N)
    bytes_accessed = (x.size * x_it + adj.size * adj_it
                      + F_in * F_out_p * w_it + F_out_p * 4
                      + B * N * F_out_p * out_it)
    cost = pl.CostEstimate(flops=int(flops), transcendentals=0,
                           bytes_accessed=int(bytes_accessed))

    x_spec = pl.BlockSpec((pl.Squeezed(), N, F_in), lambda b, r: (b, 0, 0))
    adj_spec = pl.BlockSpec((pl.Squeezed(), TR, N), lambda b, r: (b, r, 0))
    w_spec = pl.BlockSpec((F_in, F_out_p), lambda b, r: (0, 0))
    b_spec = pl.BlockSpec((1, F_out_p), lambda b, r: (0, 0))
    out_spec = pl.BlockSpec((pl.Squeezed(), TR, F_out_p), lambda b, r: (b, r, 0))

    if use_fused:
        kernel = _gcn_kernel_fused
        scratch_shapes = ()
        dim_sem = ("parallel", "parallel")
    else:
        kernel = _gcn_kernel_scratch
        scratch_shapes = [pltpu.VMEM((N, F_out_p), compute_dtype)]
        dim_sem = ("parallel", "arbitrary")

    out_padded = pl.pallas_call(
        kernel,
        out_shape=jax.ShapeDtypeStruct((B, N, F_out_p), out_dtype),
        grid_spec=pltpu.PrefetchScalarGridSpec(
            num_scalar_prefetch=0,
            grid=(B, n_tiles),
            in_specs=[x_spec, adj_spec, w_spec, b_spec],
            out_specs=out_spec,
            scratch_shapes=scratch_shapes,
        ),
        compiler_params=pltpu.CompilerParams(
            dimension_semantics=dim_sem,
            vmem_limit_bytes=vmem_limit,
        ),
        cost_estimate=cost,
    )(x, adj, w, bias2d)

    if F_out_p != F_out:
        return out_padded[:, :, :F_out]
    return out_padded


def init_graph_convolution_params(key, in_features, out_features, bias=False):
    """Deterministic parameter init mirroring GraphConvolution.reset_parameters."""
    stdv = 1.0 / math.sqrt(out_features)  # 1 / sqrt(weight.size(1))
    k_w, k_b = jax.random.split(key)
    weight = jax.random.uniform(
        k_w, (in_features, out_features), minval=-stdv, maxval=stdv, dtype=jnp.float32
    )
    b = None
    if bias:
        b = jax.random.uniform(
            k_b, (1, 1, out_features), minval=-stdv, maxval=stdv, dtype=jnp.float32
        )
    return weight, b


if __name__ == "__main__":
    key = jax.random.PRNGKey(0)
    ks = jax.random.split(key, 8)

    # Small shapes consistent with the module: a batch of small graphs.
    B, N, F_in, F_out = 2, 16, 8, 32
    x = jax.random.normal(ks[0], (B, N, F_in), dtype=jnp.float32)
    adj = jax.random.normal(ks[1], (B, N, N), dtype=jnp.float32)
    weight, bias = init_graph_convolution_params(ks[2], F_in, F_out, bias=True)
    ref = jnp.matmul(adj, jnp.matmul(x, weight)) + bias

    # 1) default path: bf16 MXU operands (f32 accumulation), bias=True.
    out_bf = jax.block_until_ready(graph_convolution(x, adj, weight, bias))
    assert out_bf.shape == (B, N, F_out)
    assert jnp.allclose(out_bf, ref, atol=7e-2, rtol=7e-2)

    # 2) full-precision path, bias=True.
    out_f32 = jax.block_until_ready(
        graph_convolution(x, adj, weight, bias, compute_dtype=jnp.float32))
    assert jnp.allclose(out_f32, ref, atol=1e-5, rtol=1e-5)

    # 3) no bias (module default bias=False).
    out_nb = jax.block_until_ready(
        graph_convolution(x, adj, weight, None, compute_dtype=jnp.float32))
    assert jnp.allclose(out_nb, jnp.matmul(adj, jnp.matmul(x, weight)),
                        atol=1e-5, rtol=1e-5)

    # 4) adjacency pre-stored in bf16 (zero-copy compute-dtype path).
    out_pre = jax.block_until_ready(
        graph_convolution(x, adj.astype(jnp.bfloat16), weight, bias))
    assert jnp.allclose(out_pre, ref, atol=7e-2, rtol=7e-2)

    # 5) ragged multi-tile path (N % TR != 0): persistent support scratch,
    #    partial last row tile, F_out lane padding + final slice.
    B2, N2, F_in2, F_out2 = 2, 50, 12, 20
    x2 = jax.random.normal(ks[3], (B2, N2, F_in2), dtype=jnp.float32)
    adj2 = jax.random.normal(ks[4], (B2, N2, N2), dtype=jnp.float32)
    w2 = jax.random.uniform(ks[5], (F_in2, F_out2), minval=-0.2, maxval=0.2,
                            dtype=jnp.float32)
    out2 = jax.block_until_ready(
        graph_convolution(x2, adj2, w2, None, compute_dtype=jnp.float32,
                          row_tile=16))
    assert out2.shape == (B2, N2, F_out2)
    assert jnp.allclose(out2, jnp.matmul(adj2, jnp.matmul(x2, w2)),
                        atol=1e-4, rtol=1e-4)

    # 6) B == 1 with a cheap x@W: fused (scratch-free) kernel, both grid axes
    #    parallel so v7x's second TensorCore helps on a single graph.
    B3, N3, F_in3, F_out3 = 1, 128, 4, 32
    x3 = jax.random.normal(ks[6], (B3, N3, F_in3), dtype=jnp.float32)
    adj3 = jax.random.normal(ks[7], (B3, N3, N3), dtype=jnp.float32)
    w3 = jax.random.uniform(ks[2], (F_in3, F_out3), minval=-0.3, maxval=0.3,
                            dtype=jnp.float32)
    out3 = jax.block_until_ready(
        graph_convolution(x3, adj3, w3, None, compute_dtype=jnp.float32,
                          row_tile=32))
    assert out3.shape == (B3, N3, F_out3)
    assert jnp.allclose(out3, jnp.matmul(adj3, jnp.matmul(x3, w3)),
                        atol=1e-4, rtol=1e-4)

    print("KERNEL_OK")
</pallas_src>

<mosaic_0001>
module attributes {stable_mosaic.version = 11 : i64} {
  func.func @_gcn_kernel_fused(%arg0: i32, %arg1: i32, %arg2: memref<1x16x8xf32, #tpu.memory_space<vmem>>, %arg3: memref<1x16x16xf32, #tpu.memory_space<vmem>>, %arg4: memref<8x128xbf16, #tpu.memory_space<vmem>>, %arg5: memref<1x128xf32, #tpu.memory_space<vmem>>, %arg6: memref<1x16x128xf32, #tpu.memory_space<vmem>>) attributes {dimension_semantics = [#tpu.dimension_semantics<parallel>, #tpu.dimension_semantics<parallel>], iteration_bounds = array<i64: 2, 1>, scalar_prefetch = 0 : i64, scratch_operands = 0 : i64, tpu.core_type = #tpu.core_type<tc>, window_params = [{transform_indices = @transform_0, window_bounds = array<i64: 1, 16, 8>}, {transform_indices = @transform_1, window_bounds = array<i64: 1, 16, 16>}, {pipeline_mode = #tpu.pipeline_mode<synchronous>, transform_indices = @transform_2, window_bounds = array<i64: 8, 128>}, {pipeline_mode = #tpu.pipeline_mode<synchronous>, transform_indices = @transform_3, window_bounds = array<i64: 1, 128>}, {transform_indices = @transform_4, window_bounds = array<i64: 1, 16, 128>}]} {
    %c0 = arith.constant 0 : index
    %c0_0 = arith.constant 0 : index
    %c0_1 = arith.constant 0 : index
    %0 = vector.load %arg2[%c0, %c0_0, %c0_1] : memref<1x16x8xf32, #tpu.memory_space<vmem>>, vector<1x16x8xf32>
    %1 = vector.shape_cast %0 : vector<1x16x8xf32> to vector<16x8xf32>
    %2 = arith.truncf %1 : vector<16x8xf32> to vector<16x8xbf16>
    %c0_2 = arith.constant 0 : index
    %c0_3 = arith.constant 0 : index
    %3 = vector.load %arg4[%c0_2, %c0_3] : memref<8x128xbf16, #tpu.memory_space<vmem>>, vector<8x128xbf16>
    %cst = arith.constant dense<0.000000e+00> : vector<16x128xf32>
    %4 = tpu.matmul %2, %3, %cst {dimension_numbers = #tpu.dot_dimension_numbers<[1], [0], [0], [1], [0, 0, 1, 1], [], []>} : vector<16x8xbf16>, vector<8x128xbf16>, vector<16x128xf32> -> vector<16x128xf32>
    %5 = arith.truncf %4 : vector<16x128xf32> to vector<16x128xbf16>
    %c0_4 = arith.constant 0 : index
    %c0_5 = arith.constant 0 : index
    %c0_6 = arith.constant 0 : index
    %6 = vector.load %arg3[%c0_4, %c0_5, %c0_6] : memref<1x16x16xf32, #tpu.memory_space<vmem>>, vector<1x16x16xf32>
    %7 = vector.shape_cast %6 : vector<1x16x16xf32> to vector<16x16xf32>
    %8 = arith.truncf %7 : vector<16x16xf32> to vector<16x16xbf16>
    %cst_7 = arith.constant dense<0.000000e+00> : vector<16x128xf32>
    %9 = tpu.matmul %8, %5, %cst_7 {dimension_numbers = #tpu.dot_dimension_numbers<[1], [0], [0], [1], [0, 0, 1, 1], [], []>} : vector<16x16xbf16>, vector<16x128xbf16>, vector<16x128xf32> -> vector<16x128xf32>
    %c0_8 = arith.constant 0 : index
    %c0_9 = arith.constant 0 : index
    %10 = vector.load %arg5[%c0_8, %c0_9] : memref<1x128xf32, #tpu.memory_space<vmem>>, vector<1x128xf32>
    %11 = vector.broadcast %10 : vector<1x128xf32> to vector<16x128xf32>
    %12 = arith.addf %9, %11 : vector<16x128xf32>
    %c0_10 = arith.constant 0 : index
    %c0_11 = arith.constant 0 : index
    %c0_12 = arith.constant 0 : index
    %13 = vector.load %arg6[%c0_10, %c0_11, %c0_12] : memref<1x16x128xf32, #tpu.memory_space<vmem>>, vector<1x16x128xf32>
    %14 = vector.shape_cast %13 : vector<1x16x128xf32> to vector<16x128xf32>
    %15 = vector.shape_cast %12 : vector<16x128xf32> to vector<1x16x128xf32>
    tpu.vector_store %arg6[%c0_10, %c0_11, %c0_12], %15 {strides = array<i32>} : memref<1x16x128xf32, #tpu.memory_space<vmem>>, vector<1x16x128xf32>,
    return
  }
  func.func @transform_0(%arg0: i32, %arg1: i32) -> (i32, i32, i32) {
    %c0_i32 = arith.constant 0 : i32
    %c0_i32_0 = arith.constant 0 : i32
    %c0_i32_1 = arith.constant 0 : i32
    return %arg0, %c0_i32, %c0_i32_0 : i32, i32, i32
  }
  func.func @transform_1(%arg0: i32, %arg1: i32) -> (i32, i32, i32) {
    %c0_i32 = arith.constant 0 : i32
    %c0_i32_0 = arith.constant 0 : i32
    return %arg0, %arg1, %c0_i32 : i32, i32, i32
  }
  func.func @transform_2(%arg0: i32, %arg1: i32) -> (i32, i32) {
    %c0_i32 = arith.constant 0 : i32
    %c0_i32_0 = arith.constant 0 : i32
    %c0_i32_1 = arith.constant 0 : i32
    return %c0_i32, %c0_i32_0 : i32, i32
  }
  func.func @transform_3(%arg0: i32, %arg1: i32) -> (i32, i32) {
    %c0_i32 = arith.constant 0 : i32
    %c0_i32_0 = arith.constant 0 : i32
    %c0_i32_1 = arith.constant 0 : i32
    return %c0_i32, %c0_i32_0 : i32, i32
  }
  func.func @transform_4(%arg0: i32, %arg1: i32) -> (i32, i32, i32) {
    %c0_i32 = arith.constant 0 : i32
    %c0_i32_0 = arith.constant 0 : i32
    return %arg0, %arg1, %c0_i32 : i32, i32, i32
  }
}

</mosaic_0001>

<llo_original>
// kernel: tpu_custom_call.1
$region0: #{tpu_custom_call.1}
  #allocation0 [shape = 'u32[]', space=smem, size = 0x4, offset = 0x4, fixed_abs, tag = 'smem constant byte address 0x4 - core index']
  #allocation1 [shape = 'u32[144,128]{1,0:T(1,128)}', space=vmem, size = 0x12000, scoped, tag = 'internal scratch']
  %s0 = inlined_call_operand.vmem [shape: f32[2,16,8], index: 0, kind: input, shape index: {}]
  %s1 = inlined_call_operand.vmem [shape: f32[2,16,16], index: 1, kind: input, shape index: {}]
  %s2 = inlined_call_operand.vmem [shape: bf16[8,128], index: 2, kind: input, shape index: {}]
  %s3 = inlined_call_operand.vmem [shape: f32[1,128], index: 3, kind: input, shape index: {}]
  %s4 = inlined_call_operand.hbm [shape: f32[2,16,128], index: 4, kind: output, shape index: {}]
  %s5 = sld [smem:[#allocation0]]
  $region49: #{tpu_custom_call.1} parent=0
    _
  %s7 = ssub.s32 1, %s5
  %s8 = scalar_select 0, %s7, %s5
  $region1: #{tpu_custom_call.1} parent=0
    #allocation2 [shape = 'u8[16384]{0}', space=vmem, size = 0x4000, scoped, tag = 'output window, operand 0']
    #allocation3 [shape = 's32[2]{0}', space=sflag, size = 0x8, scoped, tag = 'scoped memory for tpu_custom_call.1']
    %9 = vsyncpa [#allocation3], 0
    %s10 = scalar_lea.sflag [#allocation3], 1
    %11 = vsyncpa %s10, 0
    loop: start=0, step=1, limit=4
    $region2: #{tpu_custom_call.1} parent=1 // loop_pre_header
      _
    $region3: #{tpu_custom_call.1} parent=1 // loop_header
      %s13 = sphi 0, %s17
      %p14 = scmp.ge.s32.totalorder %s13, 4
      %s20 = sphi 0, %s32
      %s21 = sphi 0, %s28
      %s22 = sphi 0, %s20
      %s23 = sphi 0, %s21
      %s24 = sphi 0, %s22
      %s25 = sphi 0, %s23
      %s35 = sphi 0, %s37
      %s38 = sphi 0, %s35
      %s39 = sphi 0, %s38
      %s55 = sphi 0, %s39
      %s63 = sphi 0, %s65
      %s66 = sphi 0, %s63
      %s67 = sphi 0, %s66
      %s83 = sphi 0, %s67
      %s87 = sphi 0, %s87
      %s89 = sphi 0, %s87
      %s90 = sphi 0, %s89
      %s104 = sphi 0, %s90
      %s108 = sphi 0, %s108
      %s110 = sphi 0, %s108
      %s111 = sphi 0, %s110
      %s125 = sphi 0, %s111
      %s133 = sphi 0, %s135
      %s136 = sphi 0, %s133
      %s137 = sphi 0, %s136
      %s153 = sphi 0, %s137
    $region4: #{tpu_custom_call.1} parent=1 // loop_header_branch
      %16 = sbr.rel (%p14) target = $region8
    $region5: #{tpu_custom_call.1} parent=1 // loop_body
      %s18 = ssub.s32 %s13, 1
      %s19 = ssub.s32 %s13, 2
      %s26 = sadd.s32 1, %s21
      %p27 = scmp.ge.s32.totalorder %s26, 1
      %s28 = scalar_select %p27, 0, %s26
      %s29 = sadd.s32 1, %s20
      %s30 = scalar_select %p27, %s29, %s20
      %p31 = scmp.ge.s32.totalorder %s30, 2
      %s32 = scalar_select %p31, 0, %s30
      %s33 = ssub.s32 %s20, %s32
      %p34 = scmp.eq.s32.totalorder %s33, 0
      %s36 = sadd.s32 %s35, 1
      %s37 = scalar_select %p34, %s35, %s36
      %p40 = pneg %p34
      %p41 = scmp.eq.s32.totalorder %s13, 1
      %p42 = por %p40, %p41
      %p43 = scmp.ne.s32.totalorder %s35, %s38
      %p44 = scmp.eq.s32.totalorder %s13, 0
      %p45 = por %p43, %p44
      %p46 = scmp.ne.s32.totalorder %s35, %s38
      %p47 = scmp.eq.s32.totalorder %s18, 1
      %p48 = por %p46, %p47
      %p49 = scmp.ne.s32.totalorder %s38, %s39
      %p50 = scmp.eq.s32.totalorder %s18, 0
      %p51 = por %p49, %p50
      %p52 = scmp.ne.s32.totalorder %s38, %s39
      %p53 = scmp.eq.s32.totalorder %s19, 1
      %p54 = por %p52, %p53
      %p56 = scmp.ne.s32.totalorder %s39, %s55
      %p57 = scmp.eq.s32.totalorder %s19, 0
      %p58 = por %p56, %p57
      %s59 = ssub.s32 %s20, %s32
      %s60 = ssub.s32 %s21, %s28
      %s61 = sor.u32 %s59, %s60
      %p62 = scmp.eq.s32.totalorder %s61, 0
      %s64 = sadd.s32 %s63, 1
      %s65 = scalar_select %p62, %s63, %s64
      %p68 = pneg %p62
      %p69 = scmp.eq.s32.totalorder %s13, 1
      %p70 = por %p68, %p69
      %p71 = scmp.ne.s32.totalorder %s63, %s66
      %p72 = scmp.eq.s32.totalorder %s13, 0
      %p73 = por %p71, %p72
      %p74 = scmp.ne.s32.totalorder %s63, %s66
      %p75 = scmp.eq.s32.totalorder %s18, 1
      %p76 = por %p74, %p75
      %p77 = scmp.ne.s32.totalorder %s66, %s67
      %p78 = scmp.eq.s32.totalorder %s18, 0
      %p79 = por %p77, %p78
      %p80 = scmp.ne.s32.totalorder %s66, %s67
      %p81 = scmp.eq.s32.totalorder %s19, 1
      %p82 = por %p80, %p81
      %p84 = scmp.ne.s32.totalorder %s67, %s83
      %p85 = scmp.eq.s32.totalorder %s19, 0
      %p86 = por %p84, %p85
      %s88 = sadd.s32 %s87, 1
      %p91 = scmp.eq.s32.totalorder %s13, 1
      %p92 = scmp.ne.s32.totalorder %s87, %s89
      %p93 = scmp.eq.s32.totalorder %s13, 0
      %p94 = por %p92, %p93
      %p95 = scmp.ne.s32.totalorder %s87, %s89
      %p96 = scmp.eq.s32.totalorder %s18, 1
      %p97 = por %p95, %p96
      %p98 = scmp.ne.s32.totalorder %s89, %s90
      %p99 = scmp.eq.s32.totalorder %s18, 0
      %p100 = por %p98, %p99
      %p101 = scmp.ne.s32.totalorder %s89, %s90
      %p102 = scmp.eq.s32.totalorder %s19, 1
      %p103 = por %p101, %p102
      %p105 = scmp.ne.s32.totalorder %s90, %s104
      %p106 = scmp.eq.s32.totalorder %s19, 0
      %p107 = por %p105, %p106
      %s109 = sadd.s32 %s108, 1
      %p112 = scmp.eq.s32.totalorder %s13, 1
      %p113 = scmp.ne.s32.totalorder %s108, %s110
      %p114 = scmp.eq.s32.totalorder %s13, 0
      %p115 = por %p113, %p114
      %p116 = scmp.ne.s32.totalorder %s108, %s110
      %p117 = scmp.eq.s32.totalorder %s18, 1
      %p118 = por %p116, %p117
      %p119 = scmp.ne.s32.totalorder %s110, %s111
      %p120 = scmp.eq.s32.totalorder %s18, 0
      %p121 = por %p119, %p120
      %p122 = scmp.ne.s32.totalorder %s110, %s111
      %p123 = scmp.eq.s32.totalorder %s19, 1
      %p124 = por %p122, %p123
      %p126 = scmp.ne.s32.totalorder %s111, %s125
      %p127 = scmp.eq.s32.totalorder %s19, 0
      %p128 = por %p126, %p127
      %s129 = ssub.s32 %s20, %s32
      %s130 = ssub.s32 %s21, %s28
      %s131 = sor.u32 %s129, %s130
      %p132 = scmp.eq.s32.totalorder %s131, 0
      %s134 = sadd.s32 %s133, 1
      %s135 = scalar_select %p132, %s133, %s134
      %p138 = pneg %p132
      %p139 = scmp.eq.s32.totalorder %s13, 1
      %p140 = por %p138, %p139
      %p141 = scmp.ne.s32.totalorder %s133, %s136
      %p142 = scmp.eq.s32.totalorder %s13, 0
      %p143 = por %p141, %p142
      %p144 = scmp.ne.s32.totalorder %s133, %s136
      %p145 = scmp.eq.s32.totalorder %s18, 1
      %p146 = por %p144, %p145
      %p147 = scmp.ne.s32.totalorder %s136, %s137
      %p148 = scmp.eq.s32.totalorder %s18, 0
      %p149 = por %p147, %p148
      %p150 = scmp.ne.s32.totalorder %s136, %s137
      %p151 = scmp.eq.s32.totalorder %s19, 1
      %p152 = por %p150, %p151
      %p154 = scmp.ne.s32.totalorder %s137, %s153
      %p155 = scmp.eq.s32.totalorder %s19, 0
      %p156 = por %p154, %p155
      %p157 = scmp.le.s32.totalorder 1, %s13
      %p158 = scmp.lt.s32.totalorder %s13, 3
      %p159 = pnand %p157, %p158
      %p160 = pneg %p159
      // Predicated region
      $region9: #{tpu_custom_call.1} parent=5 // pred_check
        _
      $region10: #{tpu_custom_call.1} parent=5 // pred_check_branch
        %162 = sbr.rel (%p159) target = $region12
      $region11: #{tpu_custom_call.1} parent=5 // pred_region
        %s163 = ssub.s32 %s13, 1
        // Predicated region
        $region13: #{tpu_custom_call.1} parent=11 // pred_check
          %p164 = pneg %p100
        $region14: #{tpu_custom_call.1} parent=11 // pred_check_branch
          %166 = sbr.rel (%p164) target = $region16
        $region15: #{tpu_custom_call.1} parent=11 // pred_region
          _
        $region16: #{tpu_custom_call.1} parent=11 // pred_fallthru
          _
        // Predicated region
        $region17: #{tpu_custom_call.1} parent=11 // pred_check
          %p167 = pneg %p121
        $region18: #{tpu_custom_call.1} parent=11 // pred_check_branch
          %169 = sbr.rel (%p167) target = $region20
        $region19: #{tpu_custom_call.1} parent=11 // pred_region
          _
        $region20: #{tpu_custom_call.1} parent=11 // pred_fallthru
          _
      $region12: #{tpu_custom_call.1} parent=5 // pred_fallthru
        _
      %p170 = scmp.lt.s32.totalorder %s13, 2
      // Predicated region
      $region21: #{tpu_custom_call.1} parent=5 // pred_check
        %p171 = pneg %p170
      $region22: #{tpu_custom_call.1} parent=5 // pred_check_branch
        %173 = sbr.rel (%p171) target = $region24
      $region23: #{tpu_custom_call.1} parent=5 // pred_region
        // Predicated region
        $region25: #{tpu_custom_call.1} parent=23 // pred_check
          %p174 = pneg %p45
        $region26: #{tpu_custom_call.1} parent=23 // pred_check_branch
          %176 = sbr.rel (%p174) target = $region28
        $region27: #{tpu_custom_call.1} parent=23 // pred_region
          %p177 = scmp.lt.s32.totalorder %s20, 1
          %s178 = scalar_select %p177, %s20, 1
          %s179 = smul.addr %s178, 2
          %s180 = smul.addr %s179, 8
          %s181 = scalar_lea.vmem %s0, %s180
        $region28: #{tpu_custom_call.1} parent=23 // pred_fallthru
          _
        // Predicated region
        $region29: #{tpu_custom_call.1} parent=23 // pred_check
          %p182 = pneg %p73
        $region30: #{tpu_custom_call.1} parent=23 // pred_check_branch
          %184 = sbr.rel (%p182) target = $region32
        $region31: #{tpu_custom_call.1} parent=23 // pred_region
          %s185 = smul.u32 2, %s21
          %p186 = scmp.lt.s32.totalorder %s20, 1
          %s187 = scalar_select %p186, %s20, 1
          %p188 = scmp.lt.s32.totalorder %s185, 1
          %s189 = scalar_select %p188, %s185, 1
          %s190 = smul.addr %s187, 2
          %s191 = sadd.s32 %s189, %s190
          %s192 = smul.addr %s191, 8
          %s193 = scalar_lea.vmem %s1, %s192
          %s194 = smul.u32 2, %s21
        $region32: #{tpu_custom_call.1} parent=23 // pred_fallthru
          _
      $region24: #{tpu_custom_call.1} parent=5 // pred_fallthru
        _
      %p195 = scmp.le.s32.totalorder 1, %s13
      %p196 = scmp.lt.s32.totalorder %s13, 3
      %p197 = pnand %p195, %p196
      %p198 = pneg %p197
      // Predicated region
      $region33: #{tpu_custom_call.1} parent=5 // pred_check
        _
      $region34: #{tpu_custom_call.1} parent=5 // pred_check_branch
        %200 = sbr.rel (%p197) target = $region36
      $region35: #{tpu_custom_call.1} parent=5 // pred_region
        %s201 = ssub.s32 %s13, 1
        %p202 = scmp.lt.s32.totalorder %s22, 1
        %s203 = scalar_select %p202, %s22, 1
        %s204 = smul.addr %s203, 2
        %s205 = smul.addr %s204, 8
        %s206 = scalar_lea.vmem %s0, %s205
        %p207 = pneg %p51
        %p208 = pneg %p48
        %s209 = smul.u32 2, %s23
        %p210 = scmp.lt.s32.totalorder %s22, 1
        %s211 = scalar_select %p210, %s22, 1
        %p212 = scmp.lt.s32.totalorder %s209, 1
        %s213 = scalar_select %p212, %s209, 1
        %s214 = smul.addr %s211, 2
        %s215 = sadd.s32 %s213, %s214
        %s216 = smul.addr %s215, 8
        %s217 = scalar_lea.vmem %s1, %s216
        %p218 = pneg %p79
        %p219 = pneg %p76
        %p220 = pneg %p100
        %p221 = pneg %p97
        %p222 = pneg %p121
        %p223 = pneg %p118
        %p224 = pneg %p149
        %p225 = pneg %p146
        %s226 = sand.u32 %s136, 1
        %s227 = scalar_lea.sflag [#allocation3], %s226
        %s228 = sand.u32 %s136, 1
        %s229 = smul.addr %s228, 16
        %s230 = scalar_lea.vmem [#allocation2], %s229
        %p231 = scmp.lt.s32.totalorder %s22, 1
        %s232 = scalar_select %p231, %s22, 1
        %s233 = smul.addr %s232, 2
        %s234 = smul.addr %s233, 8
        %s235 = scalar_lea.vmem %s0, %s234
        %s236 = smul.u32 2, %s23
        %p237 = scmp.lt.s32.totalorder %s22, 1
        %s238 = scalar_select %p237, %s22, 1
        %p239 = scmp.lt.s32.totalorder %s236, 1
        %s240 = scalar_select %p239, %s236, 1
        %s241 = smul.addr %s238, 2
        %s242 = sadd.s32 %s240, %s241
        %s243 = smul.addr %s242, 8
        %s244 = scalar_lea.vmem %s1, %s243
        %s245 = smul.u32 2, %s23
        %s246 = smul.u32 2, %s23
        %v248 = vld [vmem:[%s235] sm:$0xff]
        %v249 = vld [vmem:[%s235 + $0x8] sm:$0xff]
        %v250 = vpack.c.bf16 %v249, %v248
        %v251 = vld [vmem:[%s2] sm:$0xf]
        %vm252 = vcmask 64512
        %v254 = vsel %vm252, %v250, 0
        %vm256 = vcmask 1043456
        %v258 = vsel %vm256, %v251, 0
        %260 = vmatprep.subr.bf16.mxu0 0
        %261 = vmatpush1.bf16.msra.mxu0 %v258
        %262 = vmatprep.subr.bf16.mxu0 0
        %263 = vmatpush1.bf16.msra.mxu0 0
        %264 = vmatprep.subr.bf16.mxu0 0
        %265 = vmatpush1.bf16.msra.mxu0 0
        %266 = vmatprep.subr.bf16.mxu0 0
        %267 = vmatpush1.bf16.msra.mxu0 0
        %268 = vmatprep.subr.bf16.mxu0 0
        %269 = vmatpush1.bf16.msra.mxu0 0
        %270 = vmatprep.subr.bf16.mxu0 0
        %271 = vmatpush1.bf16.msra.mxu0 0
        %272 = vmatprep.subr.bf16.mxu0 0
        %273 = vmatpush1.bf16.msra.mxu0 0
        %274 = vmatprep.subr.bf16.mxu0 0
        %275 = vmatpush1.bf16.msra.mxu0 0
        %276 = vmatprep.subr.bf16.mxu0 0
        %277 = vmatpush1.bf16.msra.mxu0 0
        %278 = vmatprep.subr.bf16.mxu0 0
        %279 = vmatpush1.bf16.msra.mxu0 0
        %280 = vmatprep.subr.bf16.mxu0 0
        %281 = vmatpush1.bf16.msra.mxu0 0
        %282 = vmatprep.subr.bf16.mxu0 0
        %283 = vmatpush1.bf16.msra.mxu0 0
        %284 = vmatprep.subr.bf16.mxu0 0
        %285 = vmatpush1.bf16.msra.mxu0 0
        %286 = vmatprep.subr.bf16.mxu0 0
        %287 = vmatpush1.bf16.msra.mxu0 0
        %288 = vmatprep.subr.bf16.mxu0 0
        %289 = vmatpush1.bf16.msra.mxu0 0
        %290 = vmatprep.subr.bf16.mxu0 0
        %291 = vmatpush1.bf16.msra.mxu0 0
        %292 = vmatprep.mubr.bf16.mxu0 0
        %293 = vmatmul.mubr.bf16.gmra.mrb[0].mxu0 %v254
        %v294 = vpop.f32.mrb[0].mxu0
        %v295 = vadd.f32 0.0, %v294
        %v296 = vpop.f32.mrb[0].mxu0
        %v297 = vpop.f32.mrb[0].mxu0
        %v298 = vadd.f32 0.0, %v297
        %v299 = vpop.f32.mrb[0].mxu0
        %300 = vdwg.mxu0
        %v301 = vpack.c.bf16 %v298, %v295
        %v302 = vld [vmem:[%s244] sm:$0xff]
        %v303 = vld [vmem:[%s244 + $0x8] sm:$0xff]
        %v304 = vpack.c.bf16 %v303, %v302
        %v305 = vld [vmem:[%s3] sm:$0x1]
        %v307 = vlaneseq
        %v308 = vshrl.u32 %v307, 7
        %v309 = vsub.s32 0, %v308
        %v310 = vrot.slane %v305, %v309
        %vm312 = vcmask 130048
        %v314 = vsel %vm312, %v304, 0
        %316 = vmatprep.subr.bf16.mxu0 0
        %317 = vmatpush1.bf16.msra.mxu0 %v301
        %318 = vmatprep.subr.bf16.mxu0 0
        %319 = vmatpush1.bf16.msra.mxu0 0
        %320 = vmatprep.subr.bf16.mxu0 0
        %321 = vmatpush1.bf16.msra.mxu0 0
        %322 = vmatprep.subr.bf16.mxu0 0
        %323 = vmatpush1.bf16.msra.mxu0 0
        %324 = vmatprep.subr.bf16.mxu0 0
        %325 = vmatpush1.bf16.msra.mxu0 0
        %326 = vmatprep.subr.bf16.mxu0 0
        %327 = vmatpush1.bf16.msra.mxu0 0
        %328 = vmatprep.subr.bf16.mxu0 0
        %329 = vmatpush1.bf16.msra.mxu0 0
        %330 = vmatprep.subr.bf16.mxu0 0
        %331 = vmatpush1.bf16.msra.mxu0 0
        %332 = vmatprep.subr.bf16.mxu0 0
        %333 = vmatpush1.bf16.msra.mxu0 0
        %334 = vmatprep.subr.bf16.mxu0 0
        %335 = vmatpush1.bf16.msra.mxu0 0
        %336 = vmatprep.subr.bf16.mxu0 0
        %337 = vmatpush1.bf16.msra.mxu0 0
        %338 = vmatprep.subr.bf16.mxu0 0
        %339 = vmatpush1.bf16.msra.mxu0 0
        %340 = vmatprep.subr.bf16.mxu0 0
        %341 = vmatpush1.bf16.msra.mxu0 0
        %342 = vmatprep.subr.bf16.mxu0 0
        %343 = vmatpush1.bf16.msra.mxu0 0
        %344 = vmatprep.subr.bf16.mxu0 0
        %345 = vmatpush1.bf16.msra.mxu0 0
        %346 = vmatprep.subr.bf16.mxu0 0
        %347 = vmatpush1.bf16.msra.mxu0 0
        %348 = vmatprep.mubr.bf16.mxu0 0
        %349 = vmatmul.mubr.bf16.gmra.mrb[0].mxu0 %v314
        %v350 = vpop.f32.mrb[0].mxu0
        %v351 = vadd.f32 %v310, %v350
        %v352 = vpop.f32.mrb[0].mxu0
        %v353 = vpop.f32.mrb[0].mxu0
        %v354 = vadd.f32 %v310, %v353
        %v355 = vpop.f32.mrb[0].mxu0
        %356 = vdwg.mxu0
        %357 = vst [vmem:[%s230] sm:$0xff] %v351
        %358 = vst [vmem:[%s230 + $0x8] sm:$0xff] %v354
        %s359 = sand.u32 %s136, 1
        %s360 = scalar_lea.sflag [#allocation3], %s359
        %s361 = sand.u32 %s136, 1
        %s362 = smul.addr %s361, 16
        %s363 = scalar_lea.vmem [#allocation2], %s362
        // Predicated region
        $region37: #{tpu_custom_call.1} parent=35 // pred_check
          %p364 = pneg %p146
        $region38: #{tpu_custom_call.1} parent=35 // pred_check_branch
          %366 = sbr.rel (%p364) target = $region40
        $region39: #{tpu_custom_call.1} parent=35 // pred_region
          %s367 = smul.u32 2, %s23
          %s369 = ssub.s32 256, 256
          %370 = vsyncadd %s360, %s369
          %s371 = smul.addr %s22, 2
          %s372 = sadd.s32 %s367, %s371
          %s373 = smul.addr %s372, 128
          %s374 = scalar_lea.hbm %s4, %s373
          %s375 = sshll.u32 %s363, 4
          %s376 = int_to_ptr.vmem [resolvable:$true] %s375
          %381 = dma.vmem_to_hbm [thread:$0]  %s376, 256, %s374, %s360, 128, 128, 8
        $region40: #{tpu_custom_call.1} parent=35 // pred_fallthru
          _
      $region36: #{tpu_custom_call.1} parent=5 // pred_fallthru
        _
      %p382 = scmp.le.s32.totalorder 2, %s13
      // Predicated region
      $region41: #{tpu_custom_call.1} parent=5 // pred_check
        %p383 = pneg %p382
      $region42: #{tpu_custom_call.1} parent=5 // pred_check_branch
        %385 = sbr.rel (%p383) target = $region44
      $region43: #{tpu_custom_call.1} parent=5 // pred_region
        %s386 = ssub.s32 %s13, 2
        // Predicated region
        $region45: #{tpu_custom_call.1} parent=43 // pred_check
          %p387 = pneg %p152
        $region46: #{tpu_custom_call.1} parent=43 // pred_check_branch
          %389 = sbr.rel (%p387) target = $region48
        $region47: #{tpu_custom_call.1} parent=43 // pred_region
          %s390 = sand.u32 %s137, 1
          %s391 = scalar_lea.sflag [#allocation3], %s390
          %s392 = sand.u32 %s137, 1
          %s393 = smul.addr %s392, 16
          %s394 = scalar_lea.vmem [#allocation2], %s393
          %395 = dma.done %s391, 256
        $region48: #{tpu_custom_call.1} parent=43 // pred_fallthru
          _
      $region44: #{tpu_custom_call.1} parent=5 // pred_fallthru
        _
    $region6: #{tpu_custom_call.1} parent=1 // loop_footer
      %s17 = sadd.s32 1, %s13
    $region7: #{tpu_custom_call.1} parent=1 // loop_footer_branch
      %12 = sbr.rel target = $region3
    $region8: #{tpu_custom_call.1} parent=1 // loop_exit
      _
    %396 = vsyncpa [#allocation3], 1
    %s397 = scalar_lea.sflag [#allocation3], 1
    %398 = vsyncpa %s397, 1

</llo_original>
